<compile_context>
chip_gen: v7x
topology: tpu7x:2x2x1
jax: 0.10.0
libtpu: 0.0.40
codegen_flags: <defaults>
</compile_context>

<pallas_src>
import math

import jax
import jax.numpy as jnp
from jax.experimental import pallas as pl
from jax.experimental.pallas import tpu as pltpu


def _round_up(x: int, m: int) -> int:
    return ((x + m - 1) // m) * m


def _pick_token_tile(n_tok, hidden, w_bytes, o_bytes, pack, requested):
    if requested is not None:
        return max(pack, _round_up(int(requested), pack))
    # Target ~2 MiB of gathered weight rows per grid step, capped at 256 rows
    # (bounds the unrolled DMA-start loop / in-flight descriptor count).
    tile = max(1, (2 << 20) // max(1, hidden * w_bytes))
    tile = min(tile, 256)
    # VMEM budget: 2 row_buf slots + 2 pipelined output blocks <= ~24 MiB
    # (safe per-TensorCore on v7x's 64 MiB, trivially safe on v5e/v6e).
    per_tok = 2 * hidden * (w_bytes + o_bytes)
    tile = min(tile, max(1, (24 << 20) // per_tok))
    # No point tiling past the (pack-rounded) token count.
    tile = min(tile, _round_up(n_tok, pack))
    return max(pack, _round_up(tile, pack))


def _make_gather_kernel(token_tile: int):
    def kernel(ids_ref, w_hbm, out_ref, row_buf, sem):
        # ids_ref : SMEM [n_pad]                  int32 ids (scalar prefetch)
        # w_hbm   : HBM  [vocab, hidden]          weight (raw ref, no auto-DMA)
        # out_ref : VMEM [token_tile, hidden]     output tile (auto write-back)
        # row_buf : VMEM [2, token_tile, hidden]  double-buffered gather slots
        # sem     : DMA  [2]                      one semaphore per slot
        outer = pl.program_id(0)
        inner = pl.program_id(1)
        n_inner = pl.num_programs(1)
        tile = outer * n_inner + inner
        slot = inner % 2

        def issue(tile_idx, s):
            base = tile_idx * token_tile
            # SMEM id reads happen here, before any DMA wait.
            for t in range(token_tile):
                row = ids_ref[base + t]
                pltpu.make_async_copy(
                    w_hbm.at[pl.ds(row, 1), :],
                    row_buf.at[s, pl.ds(t, 1), :],
                    sem.at[s],
                ).start()

        # First tile of this core's inner loop: nothing is in flight yet.
        @pl.when(inner == 0)
        def _():
            issue(tile, slot)

        # Prefetch next tile's rows into the other slot BEFORE waiting on the
        # current slot (hides HBM gather latency across grid steps).
        @pl.when(inner + 1 < n_inner)
        def _():
            issue(tile + 1, 1 - slot)

        # Single wait per step: every row copy of this tile signaled sem[slot];
        # this wait-only descriptor's byte count equals their sum (it is never
        # started — only its dst size / semaphore are used by wait()).
        pltpu.make_async_copy(
            row_buf.at[slot],
            row_buf.at[slot],
            sem.at[slot],
        ).wait()

        # Cast (no-op when dtypes match) and store to the lane-dense out block.
        out_ref[...] = row_buf[slot].astype(out_ref.dtype)

    return kernel


def token_embedding(input_ids: jax.Array,
                    weight: jax.Array,
                    *,
                    dtype=jnp.float32,
                    token_tile: int | None = None) -> jax.Array:
    """Pallas TokenEmbedding.forward: out = weight[input_ids].astype(dtype)."""
    ids_shape = input_ids.shape
    n_tok = int(math.prod(ids_shape))
    vocab, hidden = weight.shape

    out_dtype = jnp.dtype(dtype)
    w_bytes = jnp.dtype(weight.dtype).itemsize
    o_bytes = out_dtype.itemsize
    pack = max(8, 32 // o_bytes)            # f32 -> 8, bf16 -> 16, int8/fp8 -> 32

    tt = _pick_token_tile(n_tok, hidden, w_bytes, o_bytes, pack, token_tile)

    n_tiles = pl.cdiv(n_tok, tt)
    n_outer = 2 if n_tiles >= 2 else 1      # >= 2 keeps the v7x megacore split alive
    n_inner = pl.cdiv(n_tiles, n_outer)
    n_pad = n_outer * n_inner * tt

    # Clamp ids (torch.nn.Embedding errors on OOB; clamping avoids OOB DMAs).
    # Pad tokens gather row 0 and are sliced off below.
    ids = jnp.clip(input_ids.reshape(n_tok).astype(jnp.int32), 0, vocab - 1)
    if n_pad != n_tok:
        ids = jnp.pad(ids, (0, n_pad - n_tok))
    # TODO(synk): for prefill-sized token counts (B*S >~ 64K) block the ids per tile
    # instead of scalar-prefetching the whole array (1D SMEM pads to next_pow2(4*n)).

    vmem_need = 2 * tt * hidden * (w_bytes + o_bytes) + (4 << 20)
    vmem_limit = int(min(64 << 20, max(vmem_need, 32 << 20)))

    out_flat = pl.pallas_call(
        _make_gather_kernel(tt),
        out_shape=jax.ShapeDtypeStruct((n_pad, hidden), out_dtype),
        grid_spec=pltpu.PrefetchScalarGridSpec(
            num_scalar_prefetch=1,                       # ids -> SMEM
            grid=(n_outer, n_inner),
            in_specs=[
                pl.BlockSpec(memory_space=pl.ANY),       # weight stays in HBM
            ],
            out_specs=pl.BlockSpec(
                (tt, hidden), lambda o, i, ids: (o * n_inner + i, 0)),
            scratch_shapes=[
                pltpu.VMEM((2, tt, hidden), weight.dtype),
                pltpu.SemaphoreType.DMA((2,)),
            ],
        ),
        compiler_params=pltpu.CompilerParams(
            dimension_semantics=("parallel", "arbitrary"),
            vmem_limit_bytes=vmem_limit,
        ),
        cost_estimate=pl.CostEstimate(
            flops=0,
            transcendentals=0,
            bytes_accessed=n_pad * hidden * (w_bytes + o_bytes),
        ),
    )(ids, weight)

    return out_flat[:n_tok].reshape(*ids_shape, hidden)


if __name__ == "__main__":
    # Small shapes consistent with the module: ids [B, S], weight [V, D].
    B, S, V, D = 2, 16, 256, 128
    key = jax.random.PRNGKey(0)
    k_ids, k_w = jax.random.split(key)

    input_ids = jax.random.randint(k_ids, (B, S), minval=0, maxval=V, dtype=jnp.int32)
    weight = jax.random.normal(k_w, (V, D), dtype=jnp.float32)
    ref = weight[input_ids]                               # [B, S, D] f32 gather

    # Path 1: f32 out, explicit token_tile=8 -> grid (2, 2); exercises the
    # cross-step double-buffer prefetch and the parallel outer axis.
    out = token_embedding(input_ids, weight, dtype=jnp.float32, token_tile=8)
    out = jax.block_until_ready(out)
    assert out.shape == (B, S, D) and out.dtype == jnp.float32
    assert jnp.array_equal(out, ref), "mismatch vs reference gather (f32)"

    # Path 2: bf16 out, auto tile sizing (single step); exercises the cast path.
    out_bf16 = token_embedding(input_ids, weight, dtype=jnp.bfloat16)
    out_bf16 = jax.block_until_ready(out_bf16)
    assert out_bf16.shape == (B, S, D) and out_bf16.dtype == jnp.bfloat16
    assert jnp.array_equal(out_bf16, ref.astype(jnp.bfloat16)), "mismatch (bf16)"

    # Path 3: ragged token count (exercises token-axis padding + slice-off).
    ids3 = input_ids[:1, :5]
    out3 = jax.block_until_ready(token_embedding(ids3, weight, dtype=jnp.bfloat16))
    assert out3.shape == (1, 5, D) and out3.dtype == jnp.bfloat16
    assert jnp.array_equal(out3, weight[ids3].astype(jnp.bfloat16)), "mismatch (pad)"

    print("KERNEL_OK")
</pallas_src>

<mosaic_0001>
module attributes {stable_mosaic.version = 11 : i64} {
  func.func @kernel(%arg0: i32, %arg1: i32, %arg2: memref<32xi32, #tpu.memory_space<smem>>, %arg3: memref<256x128xf32, #tpu.memory_space<any>>, %arg4: memref<8x128xf32, #tpu.memory_space<vmem>>, %arg5: memref<2x8x128xf32, #tpu.memory_space<vmem>>, %arg6: memref<2x!tpu.dma_semaphore, #tpu.memory_space<semaphore_mem>>) attributes {dimension_semantics = [#tpu.dimension_semantics<parallel>, #tpu.dimension_semantics<arbitrary>], iteration_bounds = array<i64: 2, 2>, scalar_prefetch = 1 : i64, scratch_operands = 2 : i64, tpu.core_type = #tpu.core_type<tc>, window_params = [{}, {transform_indices = @transform_1, window_bounds = array<i64: 8, 128>}]} {
    %c2_i32 = arith.constant 2 : i32
    %0 = arith.muli %arg0, %c2_i32 : i32
    %1 = arith.addi %0, %arg1 : i32
    %c2_i32_0 = arith.constant 2 : i32
    %c0_i32 = arith.constant 0 : i32
    %2 = arith.cmpi eq, %c2_i32_0, %c0_i32 : i32
    %c1_i32 = arith.constant 1 : i32
    %3 = arith.select %2, %c1_i32, %c2_i32_0 : i32
    %4 = arith.remsi %arg1, %3 : i32
    %c0_i32_1 = arith.constant 0 : i32
    %5 = arith.cmpi ne, %4, %c0_i32_1 : i32
    %c0_i32_2 = arith.constant 0 : i32
    %6 = arith.cmpi slt, %4, %c0_i32_2 : i32
    %c0_i32_3 = arith.constant 0 : i32
    %7 = arith.cmpi slt, %3, %c0_i32_3 : i32
    %8 = arith.xori %6, %7 : i1
    %9 = arith.andi %8, %5 : i1
    %10 = arith.addi %4, %3 : i32
    %11 = arith.select %9, %10, %4 : i32
    %c0_i32_4 = arith.constant 0 : i32
    %12 = arith.cmpi eq, %arg1, %c0_i32_4 : i32
    %13 = arith.extui %12 : i1 to i32
    %c0_i32_5 = arith.constant 0 : i32
    %14 = arith.cmpi ne, %13, %c0_i32_5 : i32
    scf.if %14 {
      %c8_i32 = arith.constant 8 : i32
      %29 = arith.muli %1, %c8_i32 : i32
      %c0_i32_16 = arith.constant 0 : i32
      %30 = arith.addi %29, %c0_i32_16 : i32
      %31 = arith.index_cast %30 : i32 to index
      %32 = memref.load %arg2[%31] : memref<32xi32, #tpu.memory_space<smem>>
      %c0_i32_17 = arith.constant 0 : i32
      %33 = tpu.memref_slice %arg3[%32, %c0_i32_17] : memref<256x128xf32, #tpu.memory_space<any>> -> memref<1x128xf32, #tpu.memory_space<any>>
      %c0_i32_18 = arith.constant 0 : i32
      %c0_i32_19 = arith.constant 0 : i32
      %34 = tpu.memref_slice %arg5[%11, %c0_i32_18, %c0_i32_19] : memref<2x8x128xf32, #tpu.memory_space<vmem>> -> memref<1x1x128xf32, #tpu.memory_space<vmem>>
      %35 = tpu.memref_squeeze %34 : memref<1x1x128xf32, #tpu.memory_space<vmem>> -> memref<1x128xf32, #tpu.memory_space<vmem>>
      %36 = tpu.memref_slice %arg6[%11] : memref<2x!tpu.dma_semaphore, #tpu.memory_space<semaphore_mem>> -> memref<1x!tpu.dma_semaphore, #tpu.memory_space<semaphore_mem>>
      %37 = tpu.memref_squeeze %36 : memref<1x!tpu.dma_semaphore, #tpu.memory_space<semaphore_mem>> -> memref<!tpu.dma_semaphore, #tpu.memory_space<semaphore_mem>>
      tpu.enqueue_dma source(%33 : memref<1x128xf32, #tpu.memory_space<any>>) target(%35 : memref<1x128xf32, #tpu.memory_space<vmem>>) target_semaphore(%37 : memref<!tpu.dma_semaphore, #tpu.memory_space<semaphore_mem>>)
      %c1_i32_20 = arith.constant 1 : i32
      %38 = arith.addi %29, %c1_i32_20 : i32
      %39 = arith.index_cast %38 : i32 to index
      %40 = memref.load %arg2[%39] : memref<32xi32, #tpu.memory_space<smem>>
      %c0_i32_21 = arith.constant 0 : i32
      %41 = tpu.memref_slice %arg3[%40, %c0_i32_21] : memref<256x128xf32, #tpu.memory_space<any>> -> memref<1x128xf32, #tpu.memory_space<any>>
      %c1_i32_22 = arith.constant 1 : i32
      %c0_i32_23 = arith.constant 0 : i32
      %42 = tpu.memref_slice %arg5[%11, %c1_i32_22, %c0_i32_23] : memref<2x8x128xf32, #tpu.memory_space<vmem>> -> memref<1x1x128xf32, #tpu.memory_space<vmem>>
      %43 = tpu.memref_squeeze %42 : memref<1x1x128xf32, #tpu.memory_space<vmem>> -> memref<1x128xf32, #tpu.memory_space<vmem>>
      %44 = tpu.memref_slice %arg6[%11] : memref<2x!tpu.dma_semaphore, #tpu.memory_space<semaphore_mem>> -> memref<1x!tpu.dma_semaphore, #tpu.memory_space<semaphore_mem>>
      %45 = tpu.memref_squeeze %44 : memref<1x!tpu.dma_semaphore, #tpu.memory_space<semaphore_mem>> -> memref<!tpu.dma_semaphore, #tpu.memory_space<semaphore_mem>>
      tpu.enqueue_dma source(%41 : memref<1x128xf32, #tpu.memory_space<any>>) target(%43 : memref<1x128xf32, #tpu.memory_space<vmem>>) target_semaphore(%45 : memref<!tpu.dma_semaphore, #tpu.memory_space<semaphore_mem>>)
      %c2_i32_24 = arith.constant 2 : i32
      %46 = arith.addi %29, %c2_i32_24 : i32
      %47 = arith.index_cast %46 : i32 to index
      %48 = memref.load %arg2[%47] : memref<32xi32, #tpu.memory_space<smem>>
      %c0_i32_25 = arith.constant 0 : i32
      %49 = tpu.memref_slice %arg3[%48, %c0_i32_25] : memref<256x128xf32, #tpu.memory_space<any>> -> memref<1x128xf32, #tpu.memory_space<any>>
      %c2_i32_26 = arith.constant 2 : i32
      %c0_i32_27 = arith.constant 0 : i32
      %50 = tpu.memref_slice %arg5[%11, %c2_i32_26, %c0_i32_27] : memref<2x8x128xf32, #tpu.memory_space<vmem>> -> memref<1x1x128xf32, #tpu.memory_space<vmem>>
      %51 = tpu.memref_squeeze %50 : memref<1x1x128xf32, #tpu.memory_space<vmem>> -> memref<1x128xf32, #tpu.memory_space<vmem>>
      %52 = tpu.memref_slice %arg6[%11] : memref<2x!tpu.dma_semaphore, #tpu.memory_space<semaphore_mem>> -> memref<1x!tpu.dma_semaphore, #tpu.memory_space<semaphore_mem>>
      %53 = tpu.memref_squeeze %52 : memref<1x!tpu.dma_semaphore, #tpu.memory_space<semaphore_mem>> -> memref<!tpu.dma_semaphore, #tpu.memory_space<semaphore_mem>>
      tpu.enqueue_dma source(%49 : memref<1x128xf32, #tpu.memory_space<any>>) target(%51 : memref<1x128xf32, #tpu.memory_space<vmem>>) target_semaphore(%53 : memref<!tpu.dma_semaphore, #tpu.memory_space<semaphore_mem>>)
      %c3_i32 = arith.constant 3 : i32
      %54 = arith.addi %29, %c3_i32 : i32
      %55 = arith.index_cast %54 : i32 to index
      %56 = memref.load %arg2[%55] : memref<32xi32, #tpu.memory_space<smem>>
      %c0_i32_28 = arith.constant 0 : i32
      %57 = tpu.memref_slice %arg3[%56, %c0_i32_28] : memref<256x128xf32, #tpu.memory_space<any>> -> memref<1x128xf32, #tpu.memory_space<any>>
      %c3_i32_29 = arith.constant 3 : i32
      %c0_i32_30 = arith.constant 0 : i32
      %58 = tpu.memref_slice %arg5[%11, %c3_i32_29, %c0_i32_30] : memref<2x8x128xf32, #tpu.memory_space<vmem>> -> memref<1x1x128xf32, #tpu.memory_space<vmem>>
      %59 = tpu.memref_squeeze %58 : memref<1x1x128xf32, #tpu.memory_space<vmem>> -> memref<1x128xf32, #tpu.memory_space<vmem>>
      %60 = tpu.memref_slice %arg6[%11] : memref<2x!tpu.dma_semaphore, #tpu.memory_space<semaphore_mem>> -> memref<1x!tpu.dma_semaphore, #tpu.memory_space<semaphore_mem>>
      %61 = tpu.memref_squeeze %60 : memref<1x!tpu.dma_semaphore, #tpu.memory_space<semaphore_mem>> -> memref<!tpu.dma_semaphore, #tpu.memory_space<semaphore_mem>>
      tpu.enqueue_dma source(%57 : memref<1x128xf32, #tpu.memory_space<any>>) target(%59 : memref<1x128xf32, #tpu.memory_space<vmem>>) target_semaphore(%61 : memref<!tpu.dma_semaphore, #tpu.memory_space<semaphore_mem>>)
      %c4_i32 = arith.constant 4 : i32
      %62 = arith.addi %29, %c4_i32 : i32
      %63 = arith.index_cast %62 : i32 to index
      %64 = memref.load %arg2[%63] : memref<32xi32, #tpu.memory_space<smem>>
      %c0_i32_31 = arith.constant 0 : i32
      %65 = tpu.memref_slice %arg3[%64, %c0_i32_31] : memref<256x128xf32, #tpu.memory_space<any>> -> memref<1x128xf32, #tpu.memory_space<any>>
      %c4_i32_32 = arith.constant 4 : i32
      %c0_i32_33 = arith.constant 0 : i32
      %66 = tpu.memref_slice %arg5[%11, %c4_i32_32, %c0_i32_33] : memref<2x8x128xf32, #tpu.memory_space<vmem>> -> memref<1x1x128xf32, #tpu.memory_space<vmem>>
      %67 = tpu.memref_squeeze %66 : memref<1x1x128xf32, #tpu.memory_space<vmem>> -> memref<1x128xf32, #tpu.memory_space<vmem>>
      %68 = tpu.memref_slice %arg6[%11] : memref<2x!tpu.dma_semaphore, #tpu.memory_space<semaphore_mem>> -> memref<1x!tpu.dma_semaphore, #tpu.memory_space<semaphore_mem>>
      %69 = tpu.memref_squeeze %68 : memref<1x!tpu.dma_semaphore, #tpu.memory_space<semaphore_mem>> -> memref<!tpu.dma_semaphore, #tpu.memory_space<semaphore_mem>>
      tpu.enqueue_dma source(%65 : memref<1x128xf32, #tpu.memory_space<any>>) target(%67 : memref<1x128xf32, #tpu.memory_space<vmem>>) target_semaphore(%69 : memref<!tpu.dma_semaphore, #tpu.memory_space<semaphore_mem>>)
      %c5_i32 = arith.constant 5 : i32
      %70 = arith.addi %29, %c5_i32 : i32
      %71 = arith.index_cast %70 : i32 to index
      %72 = memref.load %arg2[%71] : memref<32xi32, #tpu.memory_space<smem>>
      %c0_i32_34 = arith.constant 0 : i32
      %73 = tpu.memref_slice %arg3[%72, %c0_i32_34] : memref<256x128xf32, #tpu.memory_space<any>> -> memref<1x128xf32, #tpu.memory_space<any>>
      %c5_i32_35 = arith.constant 5 : i32
      %c0_i32_36 = arith.constant 0 : i32
      %74 = tpu.memref_slice %arg5[%11, %c5_i32_35, %c0_i32_36] : memref<2x8x128xf32, #tpu.memory_space<vmem>> -> memref<1x1x128xf32, #tpu.memory_space<vmem>>
      %75 = tpu.memref_squeeze %74 : memref<1x1x128xf32, #tpu.memory_space<vmem>> -> memref<1x128xf32, #tpu.memory_space<vmem>>
      %76 = tpu.memref_slice %arg6[%11] : memref<2x!tpu.dma_semaphore, #tpu.memory_space<semaphore_mem>> -> memref<1x!tpu.dma_semaphore, #tpu.memory_space<semaphore_mem>>
      %77 = tpu.memref_squeeze %76 : memref<1x!tpu.dma_semaphore, #tpu.memory_space<semaphore_mem>> -> memref<!tpu.dma_semaphore, #tpu.memory_space<semaphore_mem>>
      tpu.enqueue_dma source(%73 : memref<1x128xf32, #tpu.memory_space<any>>) target(%75 : memref<1x128xf32, #tpu.memory_space<vmem>>) target_semaphore(%77 : memref<!tpu.dma_semaphore, #tpu.memory_space<semaphore_mem>>)
      %c6_i32 = arith.constant 6 : i32
      %78 = arith.addi %29, %c6_i32 : i32
      %79 = arith.index_cast %78 : i32 to index
      %80 = memref.load %arg2[%79] : memref<32xi32, #tpu.memory_space<smem>>
      %c0_i32_37 = arith.constant 0 : i32
      %81 = tpu.memref_slice %arg3[%80, %c0_i32_37] : memref<256x128xf32, #tpu.memory_space<any>> -> memref<1x128xf32, #tpu.memory_space<any>>
      %c6_i32_38 = arith.constant 6 : i32
      %c0_i32_39 = arith.constant 0 : i32
      %82 = tpu.memref_slice %arg5[%11, %c6_i32_38, %c0_i32_39] : memref<2x8x128xf32, #tpu.memory_space<vmem>> -> memref<1x1x128xf32, #tpu.memory_space<vmem>>
      %83 = tpu.memref_squeeze %82 : memref<1x1x128xf32, #tpu.memory_space<vmem>> -> memref<1x128xf32, #tpu.memory_space<vmem>>
      %84 = tpu.memref_slice %arg6[%11] : memref<2x!tpu.dma_semaphore, #tpu.memory_space<semaphore_mem>> -> memref<1x!tpu.dma_semaphore, #tpu.memory_space<semaphore_mem>>
      %85 = tpu.memref_squeeze %84 : memref<1x!tpu.dma_semaphore, #tpu.memory_space<semaphore_mem>> -> memref<!tpu.dma_semaphore, #tpu.memory_space<semaphore_mem>>
      tpu.enqueue_dma source(%81 : memref<1x128xf32, #tpu.memory_space<any>>) target(%83 : memref<1x128xf32, #tpu.memory_space<vmem>>) target_semaphore(%85 : memref<!tpu.dma_semaphore, #tpu.memory_space<semaphore_mem>>)
      %c7_i32 = arith.constant 7 : i32
      %86 = arith.addi %29, %c7_i32 : i32
      %87 = arith.index_cast %86 : i32 to index
      %88 = memref.load %arg2[%87] : memref<32xi32, #tpu.memory_space<smem>>
      %c0_i32_40 = arith.constant 0 : i32
      %89 = tpu.memref_slice %arg3[%88, %c0_i32_40] : memref<256x128xf32, #tpu.memory_space<any>> -> memref<1x128xf32, #tpu.memory_space<any>>
      %c7_i32_41 = arith.constant 7 : i32
      %c0_i32_42 = arith.constant 0 : i32
      %90 = tpu.memref_slice %arg5[%11, %c7_i32_41, %c0_i32_42] : memref<2x8x128xf32, #tpu.memory_space<vmem>> -> memref<1x1x128xf32, #tpu.memory_space<vmem>>
      %91 = tpu.memref_squeeze %90 : memref<1x1x128xf32, #tpu.memory_space<vmem>> -> memref<1x128xf32, #tpu.memory_space<vmem>>
      %92 = tpu.memref_slice %arg6[%11] : memref<2x!tpu.dma_semaphore, #tpu.memory_space<semaphore_mem>> -> memref<1x!tpu.dma_semaphore, #tpu.memory_space<semaphore_mem>>
      %93 = tpu.memref_squeeze %92 : memref<1x!tpu.dma_semaphore, #tpu.memory_space<semaphore_mem>> -> memref<!tpu.dma_semaphore, #tpu.memory_space<semaphore_mem>>
      tpu.enqueue_dma source(%89 : memref<1x128xf32, #tpu.memory_space<any>>) target(%91 : memref<1x128xf32, #tpu.memory_space<vmem>>) target_semaphore(%93 : memref<!tpu.dma_semaphore, #tpu.memory_space<semaphore_mem>>)
    } else {
    }
    %c1_i32_6 = arith.constant 1 : i32
    %15 = arith.addi %arg1, %c1_i32_6 : i32
    %c2_i32_7 = arith.constant 2 : i32
    %16 = arith.cmpi slt, %15, %c2_i32_7 : i32
    %17 = arith.extui %16 : i1 to i32
    %c0_i32_8 = arith.constant 0 : i32
    %18 = arith.cmpi ne, %17, %c0_i32_8 : i32
    scf.if %18 {
      %c1_i32_16 = arith.constant 1 : i32
      %29 = arith.addi %1, %c1_i32_16 : i32
      %c1_i32_17 = arith.constant 1 : i32
      %30 = arith.subi %c1_i32_17, %11 : i32
      %c8_i32 = arith.constant 8 : i32
      %31 = arith.muli %29, %c8_i32 : i32
      %c0_i32_18 = arith.constant 0 : i32
      %32 = arith.addi %31, %c0_i32_18 : i32
      %33 = arith.index_cast %32 : i32 to index
      %34 = memref.load %arg2[%33] : memref<32xi32, #tpu.memory_space<smem>>
      %c0_i32_19 = arith.constant 0 : i32
      %35 = tpu.memref_slice %arg3[%34, %c0_i32_19] : memref<256x128xf32, #tpu.memory_space<any>> -> memref<1x128xf32, #tpu.memory_space<any>>
      %c0_i32_20 = arith.constant 0 : i32
      %c0_i32_21 = arith.constant 0 : i32
      %36 = tpu.memref_slice %arg5[%30, %c0_i32_20, %c0_i32_21] : memref<2x8x128xf32, #tpu.memory_space<vmem>> -> memref<1x1x128xf32, #tpu.memory_space<vmem>>
      %37 = tpu.memref_squeeze %36 : memref<1x1x128xf32, #tpu.memory_space<vmem>> -> memref<1x128xf32, #tpu.memory_space<vmem>>
      %38 = tpu.memref_slice %arg6[%30] : memref<2x!tpu.dma_semaphore, #tpu.memory_space<semaphore_mem>> -> memref<1x!tpu.dma_semaphore, #tpu.memory_space<semaphore_mem>>
      %39 = tpu.memref_squeeze %38 : memref<1x!tpu.dma_semaphore, #tpu.memory_space<semaphore_mem>> -> memref<!tpu.dma_semaphore, #tpu.memory_space<semaphore_mem>>
      tpu.enqueue_dma source(%35 : memref<1x128xf32, #tpu.memory_space<any>>) target(%37 : memref<1x128xf32, #tpu.memory_space<vmem>>) target_semaphore(%39 : memref<!tpu.dma_semaphore, #tpu.memory_space<semaphore_mem>>)
      %c1_i32_22 = arith.constant 1 : i32
      %40 = arith.addi %31, %c1_i32_22 : i32
      %41 = arith.index_cast %40 : i32 to index
      %42 = memref.load %arg2[%41] : memref<32xi32, #tpu.memory_space<smem>>
      %c0_i32_23 = arith.constant 0 : i32
      %43 = tpu.memref_slice %arg3[%42, %c0_i32_23] : memref<256x128xf32, #tpu.memory_space<any>> -> memref<1x128xf32, #tpu.memory_space<any>>
      %c1_i32_24 = arith.constant 1 : i32
      %c0_i32_25 = arith.constant 0 : i32
      %44 = tpu.memref_slice %arg5[%30, %c1_i32_24, %c0_i32_25] : memref<2x8x128xf32, #tpu.memory_space<vmem>> -> memref<1x1x128xf32, #tpu.memory_space<vmem>>
      %45 = tpu.memref_squeeze %44 : memref<1x1x128xf32, #tpu.memory_space<vmem>> -> memref<1x128xf32, #tpu.memory_space<vmem>>
      %46 = tpu.memref_slice %arg6[%30] : memref<2x!tpu.dma_semaphore, #tpu.memory_space<semaphore_mem>> -> memref<1x!tpu.dma_semaphore, #tpu.memory_space<semaphore_mem>>
      %47 = tpu.memref_squeeze %46 : memref<1x!tpu.dma_semaphore, #tpu.memory_space<semaphore_mem>> -> memref<!tpu.dma_semaphore, #tpu.memory_space<semaphore_mem>>
      tpu.enqueue_dma source(%43 : memref<1x128xf32, #tpu.memory_space<any>>) target(%45 : memref<1x128xf32, #tpu.memory_space<vmem>>) target_semaphore(%47 : memref<!tpu.dma_semaphore, #tpu.memory_space<semaphore_mem>>)
      %c2_i32_26 = arith.constant 2 : i32
      %48 = arith.addi %31, %c2_i32_26 : i32
      %49 = arith.index_cast %48 : i32 to index
      %50 = memref.load %arg2[%49] : memref<32xi32, #tpu.memory_space<smem>>
      %c0_i32_27 = arith.constant 0 : i32
      %51 = tpu.memref_slice %arg3[%50, %c0_i32_27] : memref<256x128xf32, #tpu.memory_space<any>> -> memref<1x128xf32, #tpu.memory_space<any>>
      %c2_i32_28 = arith.constant 2 : i32
      %c0_i32_29 = arith.constant 0 : i32
      %52 = tpu.memref_slice %arg5[%30, %c2_i32_28, %c0_i32_29] : memref<2x8x128xf32, #tpu.memory_space<vmem>> -> memref<1x1x128xf32, #tpu.memory_space<vmem>>
      %53 = tpu.memref_squeeze %52 : memref<1x1x128xf32, #tpu.memory_space<vmem>> -> memref<1x128xf32, #tpu.memory_space<vmem>>
      %54 = tpu.memref_slice %arg6[%30] : memref<2x!tpu.dma_semaphore, #tpu.memory_space<semaphore_mem>> -> memref<1x!tpu.dma_semaphore, #tpu.memory_space<semaphore_mem>>
      %55 = tpu.memref_squeeze %54 : memref<1x!tpu.dma_semaphore, #tpu.memory_space<semaphore_mem>> -> memref<!tpu.dma_semaphore, #tpu.memory_space<semaphore_mem>>
      tpu.enqueue_dma source(%51 : memref<1x128xf32, #tpu.memory_space<any>>) target(%53 : memref<1x128xf32, #tpu.memory_space<vmem>>) target_semaphore(%55 : memref<!tpu.dma_semaphore, #tpu.memory_space<semaphore_mem>>)
      %c3_i32 = arith.constant 3 : i32
      %56 = arith.addi %31, %c3_i32 : i32
      %57 = arith.index_cast %56 : i32 to index
      %58 = memref.load %arg2[%57] : memref<32xi32, #tpu.memory_space<smem>>
      %c0_i32_30 = arith.constant 0 : i32
      %59 = tpu.memref_slice %arg3[%58, %c0_i32_30] : memref<256x128xf32, #tpu.memory_space<any>> -> memref<1x128xf32, #tpu.memory_space<any>>
      %c3_i32_31 = arith.constant 3 : i32
      %c0_i32_32 = arith.constant 0 : i32
      %60 = tpu.memref_slice %arg5[%30, %c3_i32_31, %c0_i32_32] : memref<2x8x128xf32, #tpu.memory_space<vmem>> -> memref<1x1x128xf32, #tpu.memory_space<vmem>>
      %61 = tpu.memref_squeeze %60 : memref<1x1x128xf32, #tpu.memory_space<vmem>> -> memref<1x128xf32, #tpu.memory_space<vmem>>
      %62 = tpu.memref_slice %arg6[%30] : memref<2x!tpu.dma_semaphore, #tpu.memory_space<semaphore_mem>> -> memref<1x!tpu.dma_semaphore, #tpu.memory_space<semaphore_mem>>
      %63 = tpu.memref_squeeze %62 : memref<1x!tpu.dma_semaphore, #tpu.memory_space<semaphore_mem>> -> memref<!tpu.dma_semaphore, #tpu.memory_space<semaphore_mem>>
      tpu.enqueue_dma source(%59 : memref<1x128xf32, #tpu.memory_space<any>>) target(%61 : memref<1x128xf32, #tpu.memory_space<vmem>>) target_semaphore(%63 : memref<!tpu.dma_semaphore, #tpu.memory_space<semaphore_mem>>)
      %c4_i32 = arith.constant 4 : i32
      %64 = arith.addi %31, %c4_i32 : i32
      %65 = arith.index_cast %64 : i32 to index
      %66 = memref.load %arg2[%65] : memref<32xi32, #tpu.memory_space<smem>>
      %c0_i32_33 = arith.constant 0 : i32
      %67 = tpu.memref_slice %arg3[%66, %c0_i32_33] : memref<256x128xf32, #tpu.memory_space<any>> -> memref<1x128xf32, #tpu.memory_space<any>>
      %c4_i32_34 = arith.constant 4 : i32
      %c0_i32_35 = arith.constant 0 : i32
      %68 = tpu.memref_slice %arg5[%30, %c4_i32_34, %c0_i32_35] : memref<2x8x128xf32, #tpu.memory_space<vmem>> -> memref<1x1x128xf32, #tpu.memory_space<vmem>>
      %69 = tpu.memref_squeeze %68 : memref<1x1x128xf32, #tpu.memory_space<vmem>> -> memref<1x128xf32, #tpu.memory_space<vmem>>
      %70 = tpu.memref_slice %arg6[%30] : memref<2x!tpu.dma_semaphore, #tpu.memory_space<semaphore_mem>> -> memref<1x!tpu.dma_semaphore, #tpu.memory_space<semaphore_mem>>
      %71 = tpu.memref_squeeze %70 : memref<1x!tpu.dma_semaphore, #tpu.memory_space<semaphore_mem>> -> memref<!tpu.dma_semaphore, #tpu.memory_space<semaphore_mem>>
      tpu.enqueue_dma source(%67 : memref<1x128xf32, #tpu.memory_space<any>>) target(%69 : memref<1x128xf32, #tpu.memory_space<vmem>>) target_semaphore(%71 : memref<!tpu.dma_semaphore, #tpu.memory_space<semaphore_mem>>)
      %c5_i32 = arith.constant 5 : i32
      %72 = arith.addi %31, %c5_i32 : i32
      %73 = arith.index_cast %72 : i32 to index
      %74 = memref.load %arg2[%73] : memref<32xi32, #tpu.memory_space<smem>>
      %c0_i32_36 = arith.constant 0 : i32
      %75 = tpu.memref_slice %arg3[%74, %c0_i32_36] : memref<256x128xf32, #tpu.memory_space<any>> -> memref<1x128xf32, #tpu.memory_space<any>>
      %c5_i32_37 = arith.constant 5 : i32
      %c0_i32_38 = arith.constant 0 : i32
      %76 = tpu.memref_slice %arg5[%30, %c5_i32_37, %c0_i32_38] : memref<2x8x128xf32, #tpu.memory_space<vmem>> -> memref<1x1x128xf32, #tpu.memory_space<vmem>>
      %77 = tpu.memref_squeeze %76 : memref<1x1x128xf32, #tpu.memory_space<vmem>> -> memref<1x128xf32, #tpu.memory_space<vmem>>
      %78 = tpu.memref_slice %arg6[%30] : memref<2x!tpu.dma_semaphore, #tpu.memory_space<semaphore_mem>> -> memref<1x!tpu.dma_semaphore, #tpu.memory_space<semaphore_mem>>
      %79 = tpu.memref_squeeze %78 : memref<1x!tpu.dma_semaphore, #tpu.memory_space<semaphore_mem>> -> memref<!tpu.dma_semaphore, #tpu.memory_space<semaphore_mem>>
      tpu.enqueue_dma source(%75 : memref<1x128xf32, #tpu.memory_space<any>>) target(%77 : memref<1x128xf32, #tpu.memory_space<vmem>>) target_semaphore(%79 : memref<!tpu.dma_semaphore, #tpu.memory_space<semaphore_mem>>)
      %c6_i32 = arith.constant 6 : i32
      %80 = arith.addi %31, %c6_i32 : i32
      %81 = arith.index_cast %80 : i32 to index
      %82 = memref.load %arg2[%81] : memref<32xi32, #tpu.memory_space<smem>>
      %c0_i32_39 = arith.constant 0 : i32
      %83 = tpu.memref_slice %arg3[%82, %c0_i32_39] : memref<256x128xf32, #tpu.memory_space<any>> -> memref<1x128xf32, #tpu.memory_space<any>>
      %c6_i32_40 = arith.constant 6 : i32
      %c0_i32_41 = arith.constant 0 : i32
      %84 = tpu.memref_slice %arg5[%30, %c6_i32_40, %c0_i32_41] : memref<2x8x128xf32, #tpu.memory_space<vmem>> -> memref<1x1x128xf32, #tpu.memory_space<vmem>>
      %85 = tpu.memref_squeeze %84 : memref<1x1x128xf32, #tpu.memory_space<vmem>> -> memref<1x128xf32, #tpu.memory_space<vmem>>
      %86 = tpu.memref_slice %arg6[%30] : memref<2x!tpu.dma_semaphore, #tpu.memory_space<semaphore_mem>> -> memref<1x!tpu.dma_semaphore, #tpu.memory_space<semaphore_mem>>
      %87 = tpu.memref_squeeze %86 : memref<1x!tpu.dma_semaphore, #tpu.memory_space<semaphore_mem>> -> memref<!tpu.dma_semaphore, #tpu.memory_space<semaphore_mem>>
      tpu.enqueue_dma source(%83 : memref<1x128xf32, #tpu.memory_space<any>>) target(%85 : memref<1x128xf32, #tpu.memory_space<vmem>>) target_semaphore(%87 : memref<!tpu.dma_semaphore, #tpu.memory_space<semaphore_mem>>)
      %c7_i32 = arith.constant 7 : i32
      %88 = arith.addi %31, %c7_i32 : i32
      %89 = arith.index_cast %88 : i32 to index
      %90 = memref.load %arg2[%89] : memref<32xi32, #tpu.memory_space<smem>>
      %c0_i32_42 = arith.constant 0 : i32
      %91 = tpu.memref_slice %arg3[%90, %c0_i32_42] : memref<256x128xf32, #tpu.memory_space<any>> -> memref<1x128xf32, #tpu.memory_space<any>>
      %c7_i32_43 = arith.constant 7 : i32
      %c0_i32_44 = arith.constant 0 : i32
      %92 = tpu.memref_slice %arg5[%30, %c7_i32_43, %c0_i32_44] : memref<2x8x128xf32, #tpu.memory_space<vmem>> -> memref<1x1x128xf32, #tpu.memory_space<vmem>>
      %93 = tpu.memref_squeeze %92 : memref<1x1x128xf32, #tpu.memory_space<vmem>> -> memref<1x128xf32, #tpu.memory_space<vmem>>
      %94 = tpu.memref_slice %arg6[%30] : memref<2x!tpu.dma_semaphore, #tpu.memory_space<semaphore_mem>> -> memref<1x!tpu.dma_semaphore, #tpu.memory_space<semaphore_mem>>
      %95 = tpu.memref_squeeze %94 : memref<1x!tpu.dma_semaphore, #tpu.memory_space<semaphore_mem>> -> memref<!tpu.dma_semaphore, #tpu.memory_space<semaphore_mem>>
      tpu.enqueue_dma source(%91 : memref<1x128xf32, #tpu.memory_space<any>>) target(%93 : memref<1x128xf32, #tpu.memory_space<vmem>>) target_semaphore(%95 : memref<!tpu.dma_semaphore, #tpu.memory_space<semaphore_mem>>)
    } else {
    }
    %c0_i32_9 = arith.constant 0 : i32
    %c0_i32_10 = arith.constant 0 : i32
    %19 = tpu.memref_slice %arg5[%11, %c0_i32_9, %c0_i32_10] : memref<2x8x128xf32, #tpu.memory_space<vmem>> -> memref<1x8x128xf32, #tpu.memory_space<vmem>>
    %20 = tpu.memref_squeeze %19 : memref<1x8x128xf32, #tpu.memory_space<vmem>> -> memref<8x128xf32, #tpu.memory_space<vmem>>
    %c0_i32_11 = arith.constant 0 : i32
    %c0_i32_12 = arith.constant 0 : i32
    %21 = tpu.memref_slice %arg5[%11, %c0_i32_11, %c0_i32_12] : memref<2x8x128xf32, #tpu.memory_space<vmem>> -> memref<1x8x128xf32, #tpu.memory_space<vmem>>
    %22 = tpu.memref_squeeze %21 : memref<1x8x128xf32, #tpu.memory_space<vmem>> -> memref<8x128xf32, #tpu.memory_space<vmem>>
    %23 = tpu.memref_slice %arg6[%11] : memref<2x!tpu.dma_semaphore, #tpu.memory_space<semaphore_mem>> -> memref<1x!tpu.dma_semaphore, #tpu.memory_space<semaphore_mem>>
    %24 = tpu.memref_squeeze %23 : memref<1x!tpu.dma_semaphore, #tpu.memory_space<semaphore_mem>> -> memref<!tpu.dma_semaphore, #tpu.memory_space<semaphore_mem>>
    tpu.wait_dma2 semaphore(%24 : memref<!tpu.dma_semaphore, #tpu.memory_space<semaphore_mem>>) src(%20 : memref<8x128xf32, #tpu.memory_space<vmem>>) dst(%22 : memref<8x128xf32, #tpu.memory_space<vmem>>)
    %25 = arith.index_cast %11 : i32 to index
    %c0 = arith.constant 0 : index
    %c0_13 = arith.constant 0 : index
    %26 = vector.load %arg5[%25, %c0, %c0_13] : memref<2x8x128xf32, #tpu.memory_space<vmem>>, vector<1x8x128xf32>
    %27 = vector.shape_cast %26 : vector<1x8x128xf32> to vector<8x128xf32>
    %c0_14 = arith.constant 0 : index
    %c0_15 = arith.constant 0 : index
    %28 = vector.load %arg4[%c0_14, %c0_15] : memref<8x128xf32, #tpu.memory_space<vmem>>, vector<8x128xf32>
    tpu.vector_store %arg4[%c0_14, %c0_15], %27 {strides = array<i32>} : memref<8x128xf32, #tpu.memory_space<vmem>>, vector<8x128xf32>,
    return
  }
  func.func @transform_1(%arg0: i32, %arg1: i32, %arg2: memref<32xi32, #tpu.memory_space<smem>>) -> (i32, i32) {
    %c2_i32 = arith.constant 2 : i32
    %0 = arith.muli %arg0, %c2_i32 : i32
    %1 = arith.addi %0, %arg1 : i32
    %c0_i32 = arith.constant 0 : i32
    %c0_i32_0 = arith.constant 0 : i32
    return %1, %c0_i32 : i32, i32
  }
}

</mosaic_0001>

<llo_original>
// kernel: tpu_custom_call.1
$region0: #{tpu_custom_call.1}
  #allocation0 [shape = 'u32[]', space=smem, size = 0x4, offset = 0x4, fixed_abs, tag = 'smem constant byte address 0x4 - core index']
  #allocation1 [shape = 'u32[144,128]{1,0:T(1,128)}', space=vmem, size = 0x12000, scoped, tag = 'internal scratch']
  #allocation2 [shape = 'f32[2,8,128]{2,1,0:T(8,128)}', space=vmem, size = 0x2000, scoped, tag = 'scratch operand']
  #allocation3 [shape = 's32[2]{0}', space=sflag, size = 0x8, scoped, tag = 'scratch operand']
  #allocation4 [shape = 's32[1]{0}', space=sflag, size = 0x4, scoped, tag = 'scoped memory for tpu_custom_call.1']
  #allocation5 [shape = 'u8[512]{0}', space=smem, size = 0x200, scoped, tag = 'prefetched SMEM operand 0']
  #allocation8 [shape = 's32[]', space=sflag, size = 0x4, offset = 0, fixed_abs, tag = 'sflag constant byte address 0x0 - dummy sync flag']
  #allocation9 [shape = 's32[]', space=sflag, size = 0x4, offset = 0, fixed_abs, tag = 'sflag constant byte address 0x0 - dummy sync flag']
  #allocation10 [shape = 'u32[]', space=smem, size = 0x4, offset = 0x44, fixed_abs, tag = 'smem constant byte address 0x44 - assertion arg 0']
  #allocation11 [shape = 'u32[]', space=smem, size = 0x4, offset = 0x48, fixed_abs, tag = 'smem constant byte address 0x48 - assertion arg 1']
  #allocation12 [shape = 's32[]', space=sflag, size = 0x4, offset = 0, fixed_abs, tag = 'sflag constant byte address 0x0 - dummy sync flag']
  #allocation13 [shape = 's32[]', space=sflag, size = 0x4, offset = 0, fixed_abs, tag = 'sflag constant byte address 0x0 - dummy sync flag']
  #allocation14 [shape = 's32[]', space=sflag, size = 0x4, offset = 0, fixed_abs, tag = 'sflag constant byte address 0x0 - dummy sync flag']
  #allocation15 [shape = 's32[]', space=sflag, size = 0x4, offset = 0, fixed_abs, tag = 'sflag constant byte address 0x0 - dummy sync flag']
  #allocation16 [shape = 's32[]', space=sflag, size = 0x4, offset = 0, fixed_abs, tag = 'sflag constant byte address 0x0 - dummy sync flag']
  #allocation17 [shape = 's32[]', space=sflag, size = 0x4, offset = 0, fixed_abs, tag = 'sflag constant byte address 0x0 - dummy sync flag']
  #allocation18 [shape = 's32[]', space=sflag, size = 0x4, offset = 0, fixed_abs, tag = 'sflag constant byte address 0x0 - dummy sync flag']
  #allocation19 [shape = 's32[]', space=sflag, size = 0x4, offset = 0, fixed_abs, tag = 'sflag constant byte address 0x0 - dummy sync flag']
  #allocation20 [shape = 's32[]', space=sflag, size = 0x4, offset = 0, fixed_abs, tag = 'sflag constant byte address 0x0 - dummy sync flag']
  #allocation21 [shape = 's32[]', space=sflag, size = 0x4, offset = 0, fixed_abs, tag = 'sflag constant byte address 0x0 - dummy sync flag']
  #allocation22 [shape = 's32[]', space=sflag, size = 0x4, offset = 0, fixed_abs, tag = 'sflag constant byte address 0x0 - dummy sync flag']
  #allocation23 [shape = 's32[]', space=sflag, size = 0x4, offset = 0, fixed_abs, tag = 'sflag constant byte address 0x0 - dummy sync flag']
  #allocation24 [shape = 's32[]', space=sflag, size = 0x4, offset = 0, fixed_abs, tag = 'sflag constant byte address 0x0 - dummy sync flag']
  #allocation25 [shape = 's32[]', space=sflag, size = 0x4, offset = 0, fixed_abs, tag = 'sflag constant byte address 0x0 - dummy sync flag']
  #allocation26 [shape = 's32[]', space=sflag, size = 0x4, offset = 0, fixed_abs, tag = 'sflag constant byte address 0x0 - dummy sync flag']
  #allocation27 [shape = 's32[]', space=sflag, size = 0x4, offset = 0, fixed_abs, tag = 'sflag constant byte address 0x0 - dummy sync flag']
  #allocation28 [shape = 's32[]', space=sflag, size = 0x4, offset = 0, fixed_abs, tag = 'sflag constant byte address 0x0 - dummy sync flag']
  #allocation29 [shape = 's32[]', space=sflag, size = 0x4, offset = 0, fixed_abs, tag = 'sflag constant byte address 0x0 - dummy sync flag']
  #allocation30 [shape = 's32[]', space=sflag, size = 0x4, offset = 0, fixed_abs, tag = 'sflag constant byte address 0x0 - dummy sync flag']
  #allocation31 [shape = 's32[]', space=sflag, size = 0x4, offset = 0, fixed_abs, tag = 'sflag constant byte address 0x0 - dummy sync flag']
  #allocation32 [shape = 's32[]', space=sflag, size = 0x4, offset = 0, fixed_abs, tag = 'sflag constant byte address 0x0 - dummy sync flag']
  #allocation33 [shape = 's32[]', space=sflag, size = 0x4, offset = 0, fixed_abs, tag = 'sflag constant byte address 0x0 - dummy sync flag']
  #allocation34 [shape = 's32[]', space=sflag, size = 0x4, offset = 0, fixed_abs, tag = 'sflag constant byte address 0x0 - dummy sync flag']
  #allocation35 [shape = 's32[]', space=sflag, size = 0x4, offset = 0, fixed_abs, tag = 'sflag constant byte address 0x0 - dummy sync flag']
  #allocation36 [shape = 's32[]', space=sflag, size = 0x4, offset = 0, fixed_abs, tag = 'sflag constant byte address 0x0 - dummy sync flag']
  #allocation37 [shape = 's32[]', space=sflag, size = 0x4, offset = 0, fixed_abs, tag = 'sflag constant byte address 0x0 - dummy sync flag']
  #allocation38 [shape = 's32[]', space=sflag, size = 0x4, offset = 0, fixed_abs, tag = 'sflag constant byte address 0x0 - dummy sync flag']
  #allocation39 [shape = 's32[]', space=sflag, size = 0x4, offset = 0, fixed_abs, tag = 'sflag constant byte address 0x0 - dummy sync flag']
  #allocation40 [shape = 's32[]', space=sflag, size = 0x4, offset = 0, fixed_abs, tag = 'sflag constant byte address 0x0 - dummy sync flag']
  #allocation41 [shape = 's32[]', space=sflag, size = 0x4, offset = 0, fixed_abs, tag = 'sflag constant byte address 0x0 - dummy sync flag']
  %s0 = inlined_call_operand.hbm [shape: s32[32], index: 0, kind: input, shape index: {}]
  %s1 = inlined_call_operand.hbm [shape: f32[256,128], index: 1, kind: input, shape index: {}]
  %s2 = inlined_call_operand.hbm [shape: f32[32,128], index: 2, kind: output, shape index: {}]
  %s3 = sld [smem:[#allocation0]]
  $region97: #{tpu_custom_call.1} parent=0
    _
  %s5 = ssub.s32 1, %s3
  %s6 = scalar_select 0, %s5, %s3
  %8 = dma.hbm_to_smem %s0, 16, [#allocation5], [#allocation4]
  %9 = dma.done [#allocation4], 16
  %10 = sfence
  $region1: #{tpu_custom_call.1} parent=0
    #allocation6 [shape = 'u8[8192]{0}', space=vmem, size = 0x2000, scoped, tag = 'output window, operand 0']
    #allocation7 [shape = 's32[2]{0}', space=sflag, size = 0x8, scoped, tag = 'scoped memory for tpu_custom_call.1']
    %11 = vsyncpa [#allocation7], 0
    %s12 = scalar_lea.sflag [#allocation7], 1
    %13 = vsyncpa %s12, 0
    loop: start=0, step=1, limit=5
    $region2: #{tpu_custom_call.1} parent=1 // loop_pre_header
      _
    $region3: #{tpu_custom_call.1} parent=1 // loop_header
      %s15 = sphi 0, %s19
      %p16 = scmp.ge.s32.totalorder %s15, 5
      %s21 = sphi 0, %s31
      %s22 = sphi 0, %s27
      %s23 = sphi 0, %s21
      %s24 = sphi 0, %s22
      %s38 = sphi 0, %s40
      %s41 = sphi 0, %s38
      %s51 = sphi 0, %s41
    $region4: #{tpu_custom_call.1} parent=1 // loop_header_branch
      %18 = sbr.rel (%p16) target = $region8
    $region5: #{tpu_custom_call.1} parent=1 // loop_body
      %s20 = ssub.s32 %s15, 1
      %s25 = sadd.s32 1, %s22
      %p26 = scmp.ge.s32.totalorder %s25, 2
      %s27 = scalar_select %p26, 0, %s25
      %s28 = sadd.s32 1, %s21
      %s29 = scalar_select %p26, %s28, %s21
      %p30 = scmp.ge.s32.totalorder %s29, 2
      %s31 = scalar_select %p30, 0, %s29
      %s32 = smul.u32 %s21, 2
      %s33 = sadd.s32 %s32, %s22
      %s34 = smul.u32 %s31, 2
      %s35 = sadd.s32 %s34, %s27
      %s36 = ssub.s32 %s33, %s35
      %p37 = scmp.eq.s32.totalorder %s36, 0
      %s39 = sadd.s32 %s38, 1
      %s40 = scalar_select %p37, %s38, %s39
      %p42 = pneg %p37
      %p43 = scmp.eq.s32.totalorder %s15, 3
      %p44 = por %p42, %p43
      %p45 = scmp.ne.s32.totalorder %s38, %s41
      %p46 = scmp.eq.s32.totalorder %s15, 0
      %p47 = por %p45, %p46
      %p48 = scmp.ne.s32.totalorder %s38, %s41
      %p49 = scmp.eq.s32.totalorder %s20, 3
      %p50 = por %p48, %p49
      %p52 = scmp.ne.s32.totalorder %s41, %s51
      %p53 = scmp.eq.s32.totalorder %s20, 0
      %p54 = por %p52, %p53
      %p55 = scmp.lt.s32.totalorder %s15, 4
      // Predicated region
      $region9: #{tpu_custom_call.1} parent=5 // pred_check
        %p56 = pneg %p55
      $region10: #{tpu_custom_call.1} parent=5 // pred_check_branch
        %58 = sbr.rel (%p56) target = $region12
      $region11: #{tpu_custom_call.1} parent=5 // pred_region
        %p59 = pneg %p47
        %p60 = pneg %p44
        %s61 = sand.u32 %s38, 1
        %s62 = scalar_lea.sflag [#allocation7], %s61
        %s63 = sand.u32 %s38, 1
        %s64 = smul.addr %s63, 8
        %s65 = scalar_lea.vmem [#allocation6], %s64
        %s66 = smul.u32 %s21, 2
        %s67 = sadd.s32 %s66, %s22
        %s68 = smul.u32 %s21, 2
        %s69 = sadd.s32 %s68, %s22
        %p70 = scmp.lt.s32.totalorder %s22, 0
        %s71 = ssub.s32 0, %s22
        %s72 = scalar_select %p70, %s71, %s22
        %s73 = sand.u32 %s72, 1
        %s74 = ssub.s32 0, %s73
        %s75 = scalar_select %p70, %s74, %s73
        %p76 = scmp.ne.s32.totalorder %s75, 0
        %p77 = scmp.lt.s32.totalorder %s75, 0
        %p78 = pnand %p77, %p76
        %p79 = pneg %p78
        %s80 = sadd.s32 %s75, 2
        %s81 = scalar_select %p79, %s80, %s75
        %p82 = scmp.eq.s32.totalorder %s22, 0
        // Predicated region
        $region13: #{tpu_custom_call.1} parent=11 // pred_check
          %p83 = pneg %p82
        $region14: #{tpu_custom_call.1} parent=11 // pred_check_branch
          %85 = sbr.rel (%p83) target = $region16
        $region15: #{tpu_custom_call.1} parent=11 // pred_region
          %s86 = smul.u32 %s69, 8
          %s87 = sld [smem:[#allocation5 + %s86]]
          %s88 = smul.addr %s87, 16
          %s89 = scalar_lea.hbm %s1, %s88
          %s90 = smul.u32 %s81, 8
          %s91 = scalar_lea.vmem [#allocation2], %s90
          %s92 = scalar_lea.sflag [#allocation3], %s81
          // Predicated region
          $region17: #{tpu_custom_call.1} parent=15 // pred_check
            _
          $region18: #{tpu_custom_call.1} parent=15 // pred_check_branch
            %94 = sbr.rel target = $region20
          $region19: #{tpu_custom_call.1} parent=15 // pred_region
            %95 = sst [smem:[#allocation10]] [#allocation9]
            %96 = sst [smem:[#allocation11]] [#allocation8]
          $region20: #{tpu_custom_call.1} parent=15 // pred_fallthru
            _
          %98 = shalt.err (0)
          %s100 = sshll.u32 %s91, 4
          %s101 = int_to_ptr.vmem [resolvable:$true] %s100
          %103 = dma.hbm_to_vmem [thread:$0]  %s89, 16, %s101, %s92
          %s104 = sadd.s32 %s86, 1
          %s105 = sld [smem:[#allocation5 + %s104]]
          %s106 = smul.addr %s105, 16
          %s107 = scalar_lea.hbm %s1, %s106
          %s108 = sadd.s32 1, %s90
          %s109 = scalar_lea.vmem [#allocation2], %s108
          // Predicated region
          $region21: #{tpu_custom_call.1} parent=15 // pred_check
            _
          $region22: #{tpu_custom_call.1} parent=15 // pred_check_branch
            %111 = sbr.rel target = $region24
          $region23: #{tpu_custom_call.1} parent=15 // pred_region
            %112 = sst [smem:[#allocation10]] [#allocation13]
            %113 = sst [smem:[#allocation11]] [#allocation12]
          $region24: #{tpu_custom_call.1} parent=15 // pred_fallthru
            _
          %115 = shalt.err (0)
          %s117 = sshll.u32 %s109, 4
          %s118 = int_to_ptr.vmem [resolvable:$true] %s117
          %120 = dma.hbm_to_vmem [thread:$0]  %s107, 16, %s118, %s92
          %s121 = sadd.s32 %s86, 2
          %s122 = sld [smem:[#allocation5 + %s121]]
          %s123 = smul.addr %s122, 16
          %s124 = scalar_lea.hbm %s1, %s123
          %s125 = sadd.s32 2, %s90
          %s126 = scalar_lea.vmem [#allocation2], %s125
          // Predicated region
          $region25: #{tpu_custom_call.1} parent=15 // pred_check
            _
          $region26: #{tpu_custom_call.1} parent=15 // pred_check_branch
            %128 = sbr.rel target = $region28
          $region27: #{tpu_custom_call.1} parent=15 // pred_region
            %129 = sst [smem:[#allocation10]] [#allocation15]
            %130 = sst [smem:[#allocation11]] [#allocation14]
          $region28: #{tpu_custom_call.1} parent=15 // pred_fallthru
            _
          %132 = shalt.err (0)
          %s134 = sshll.u32 %s126, 4
          %s135 = int_to_ptr.vmem [resolvable:$true] %s134
          %137 = dma.hbm_to_vmem [thread:$0]  %s124, 16, %s135, %s92
          %s138 = sadd.s32 %s86, 3
          %s139 = sld [smem:[#allocation5 + %s138]]
          %s140 = smul.addr %s139, 16
          %s141 = scalar_lea.hbm %s1, %s140
          %s142 = sadd.s32 3, %s90
          %s143 = scalar_lea.vmem [#allocation2], %s142
          // Predicated region
          $region29: #{tpu_custom_call.1} parent=15 // pred_check
            _
          $region30: #{tpu_custom_call.1} parent=15 // pred_check_branch
            %145 = sbr.rel target = $region32
          $region31: #{tpu_custom_call.1} parent=15 // pred_region
            %146 = sst [smem:[#allocation10]] [#allocation17]
            %147 = sst [smem:[#allocation11]] [#allocation16]
          $region32: #{tpu_custom_call.1} parent=15 // pred_fallthru
            _
          %149 = shalt.err (0)
          %s151 = sshll.u32 %s143, 4
          %s152 = int_to_ptr.vmem [resolvable:$true] %s151
          %154 = dma.hbm_to_vmem [thread:$0]  %s141, 16, %s152, %s92
          %s155 = sadd.s32 %s86, 4
          %s156 = sld [smem:[#allocation5 + %s155]]
          %s157 = smul.addr %s156, 16
          %s158 = scalar_lea.hbm %s1, %s157
          %s159 = sadd.s32 4, %s90
          %s160 = scalar_lea.vmem [#allocation2], %s159
          // Predicated region
          $region33: #{tpu_custom_call.1} parent=15 // pred_check
            _
          $region34: #{tpu_custom_call.1} parent=15 // pred_check_branch
            %162 = sbr.rel target = $region36
          $region35: #{tpu_custom_call.1} parent=15 // pred_region
            %163 = sst [smem:[#allocation10]] [#allocation19]
            %164 = sst [smem:[#allocation11]] [#allocation18]
          $region36: #{tpu_custom_call.1} parent=15 // pred_fallthru
            _
          %166 = shalt.err (0)
          %s168 = sshll.u32 %s160, 4
          %s169 = int_to_ptr.vmem [resolvable:$true] %s168
          %171 = dma.hbm_to_vmem [thread:$0]  %s158, 16, %s169, %s92
          %s172 = sadd.s32 %s86, 5
          %s173 = sld [smem:[#allocation5 + %s172]]
          %s174 = smul.addr %s173, 16
          %s175 = scalar_lea.hbm %s1, %s174
          %s176 = sadd.s32 5, %s90
          %s177 = scalar_lea.vmem [#allocation2], %s176
          // Predicated region
          $region37: #{tpu_custom_call.1} parent=15 // pred_check
            _
          $region38: #{tpu_custom_call.1} parent=15 // pred_check_branch
            %179 = sbr.rel target = $region40
          $region39: #{tpu_custom_call.1} parent=15 // pred_region
            %180 = sst [smem:[#allocation10]] [#allocation21]
            %181 = sst [smem:[#allocation11]] [#allocation20]
          $region40: #{tpu_custom_call.1} parent=15 // pred_fallthru
            _
          %183 = shalt.err (0)
          %s185 = sshll.u32 %s177, 4
          %s186 = int_to_ptr.vmem [resolvable:$true] %s185
          %188 = dma.hbm_to_vmem [thread:$0]  %s175, 16, %s186, %s92
          %s189 = sadd.s32 %s86, 6
          %s190 = sld [smem:[#allocation5 + %s189]]
          %s191 = smul.addr %s190, 16
          %s192 = scalar_lea.hbm %s1, %s191
          %s193 = sadd.s32 6, %s90
          %s194 = scalar_lea.vmem [#allocation2], %s193
          // Predicated region
          $region41: #{tpu_custom_call.1} parent=15 // pred_check
            _
          $region42: #{tpu_custom_call.1} parent=15 // pred_check_branch
            %196 = sbr.rel target = $region44
          $region43: #{tpu_custom_call.1} parent=15 // pred_region
            %197 = sst [smem:[#allocation10]] [#allocation23]
            %198 = sst [smem:[#allocation11]] [#allocation22]
          $region44: #{tpu_custom_call.1} parent=15 // pred_fallthru
            _
          %200 = shalt.err (0)
          %s202 = sshll.u32 %s194, 4
          %s203 = int_to_ptr.vmem [resolvable:$true] %s202
          %205 = dma.hbm_to_vmem [thread:$0]  %s192, 16, %s203, %s92
          %s206 = sadd.s32 %s86, 7
          %s207 = sld [smem:[#allocation5 + %s206]]
          %s208 = smul.addr %s207, 16
          %s209 = scalar_lea.hbm %s1, %s208
          %s210 = sadd.s32 7, %s90
          %s211 = scalar_lea.vmem [#allocation2], %s210
          // Predicated region
          $region45: #{tpu_custom_call.1} parent=15 // pred_check
            _
          $region46: #{tpu_custom_call.1} parent=15 // pred_check_branch
            %213 = sbr.rel target = $region48
          $region47: #{tpu_custom_call.1} parent=15 // pred_region
            %214 = sst [smem:[#allocation10]] [#allocation25]
            %215 = sst [smem:[#allocation11]] [#allocation24]
          $region48: #{tpu_custom_call.1} parent=15 // pred_fallthru
            _
          %217 = shalt.err (0)
          %s219 = sshll.u32 %s211, 4
          %s220 = int_to_ptr.vmem [resolvable:$true] %s219
          %222 = dma.hbm_to_vmem [thread:$0]  %s209, 16, %s220, %s92
        $region16: #{tpu_custom_call.1} parent=11 // pred_fallthru
          _
        %s223 = sadd.s32 %s22, 1
        %p224 = scmp.lt.s32.totalorder %s223, 2
        // Predicated region
        $region49: #{tpu_custom_call.1} parent=11 // pred_check
          %p225 = pneg %p224
        $region50: #{tpu_custom_call.1} parent=11 // pred_check_branch
          %227 = sbr.rel (%p225) target = $region52
        $region51: #{tpu_custom_call.1} parent=11 // pred_region
          %s228 = sadd.s32 %s69, 1
          %s229 = ssub.s32 1, %s81
          %s230 = smul.u32 %s228, 8
          %s231 = sld [smem:[#allocation5 + %s230]]
          %s232 = smul.addr %s231, 16
          %s233 = scalar_lea.hbm %s1, %s232
          %s234 = smul.u32 %s229, 8
          %s235 = scalar_lea.vmem [#allocation2], %s234
          %s236 = scalar_lea.sflag [#allocation3], %s229
          // Predicated region
          $region53: #{tpu_custom_call.1} parent=51 // pred_check
            _
          $region54: #{tpu_custom_call.1} parent=51 // pred_check_branch
            %238 = sbr.rel target = $region56
          $region55: #{tpu_custom_call.1} parent=51 // pred_region
            %239 = sst [smem:[#allocation10]] [#allocation27]
            %240 = sst [smem:[#allocation11]] [#allocation26]
          $region56: #{tpu_custom_call.1} parent=51 // pred_fallthru
            _
          %242 = shalt.err (0)
          %s244 = sshll.u32 %s235, 4
          %s245 = int_to_ptr.vmem [resolvable:$true] %s244
          %247 = dma.hbm_to_vmem [thread:$0]  %s233, 16, %s245, %s236
          %s248 = sadd.s32 %s230, 1
          %s249 = sld [smem:[#allocation5 + %s248]]
          %s250 = smul.addr %s249, 16
          %s251 = scalar_lea.hbm %s1, %s250
          %s252 = sadd.s32 1, %s234
          %s253 = scalar_lea.vmem [#allocation2], %s252
          // Predicated region
          $region57: #{tpu_custom_call.1} parent=51 // pred_check
            _
          $region58: #{tpu_custom_call.1} parent=51 // pred_check_branch
            %255 = sbr.rel target = $region60
          $region59: #{tpu_custom_call.1} parent=51 // pred_region
            %256 = sst [smem:[#allocation10]] [#allocation29]
            %257 = sst [smem:[#allocation11]] [#allocation28]
          $region60: #{tpu_custom_call.1} parent=51 // pred_fallthru
            _
          %259 = shalt.err (0)
          %s261 = sshll.u32 %s253, 4
          %s262 = int_to_ptr.vmem [resolvable:$true] %s261
          %264 = dma.hbm_to_vmem [thread:$0]  %s251, 16, %s262, %s236
          %s265 = sadd.s32 %s230, 2
          %s266 = sld [smem:[#allocation5 + %s265]]
          %s267 = smul.addr %s266, 16
          %s268 = scalar_lea.hbm %s1, %s267
          %s269 = sadd.s32 2, %s234
          %s270 = scalar_lea.vmem [#allocation2], %s269
          // Predicated region
          $region61: #{tpu_custom_call.1} parent=51 // pred_check
            _
          $region62: #{tpu_custom_call.1} parent=51 // pred_check_branch
            %272 = sbr.rel target = $region64
          $region63: #{tpu_custom_call.1} parent=51 // pred_region
            %273 = sst [smem:[#allocation10]] [#allocation31]
            %274 = sst [smem:[#allocation11]] [#allocation30]
          $region64: #{tpu_custom_call.1} parent=51 // pred_fallthru
            _
          %276 = shalt.err (0)
          %s278 = sshll.u32 %s270, 4
          %s279 = int_to_ptr.vmem [resolvable:$true] %s278
          %281 = dma.hbm_to_vmem [thread:$0]  %s268, 16, %s279, %s236
          %s282 = sadd.s32 %s230, 3
          %s283 = sld [smem:[#allocation5 + %s282]]
          %s284 = smul.addr %s283, 16
          %s285 = scalar_lea.hbm %s1, %s284
          %s286 = sadd.s32 3, %s234
          %s287 = scalar_lea.vmem [#allocation2], %s286
          // Predicated region
          $region65: #{tpu_custom_call.1} parent=51 // pred_check
            _
          $region66: #{tpu_custom_call.1} parent=51 // pred_check_branch
            %289 = sbr.rel target = $region68
          $region67: #{tpu_custom_call.1} parent=51 // pred_region
            %290 = sst [smem:[#allocation10]] [#allocation33]
            %291 = sst [smem:[#allocation11]] [#allocation32]
          $region68: #{tpu_custom_call.1} parent=51 // pred_fallthru
            _
          %293 = shalt.err (0)
          %s295 = sshll.u32 %s287, 4
          %s296 = int_to_ptr.vmem [resolvable:$true] %s295
          %298 = dma.hbm_to_vmem [thread:$0]  %s285, 16, %s296, %s236
          %s299 = sadd.s32 %s230, 4
          %s300 = sld [smem:[#allocation5 + %s299]]
          %s301 = smul.addr %s300, 16
          %s302 = scalar_lea.hbm %s1, %s301
          %s303 = sadd.s32 4, %s234
          %s304 = scalar_lea.vmem [#allocation2], %s303
          // Predicated region
          $region69: #{tpu_custom_call.1} parent=51 // pred_check
            _
          $region70: #{tpu_custom_call.1} parent=51 // pred_check_branch
            %306 = sbr.rel target = $region72
          $region71: #{tpu_custom_call.1} parent=51 // pred_region
            %307 = sst [smem:[#allocation10]] [#allocation35]
            %308 = sst [smem:[#allocation11]] [#allocation34]
          $region72: #{tpu_custom_call.1} parent=51 // pred_fallthru
            _
          %310 = shalt.err (0)
          %s312 = sshll.u32 %s304, 4
          %s313 = int_to_ptr.vmem [resolvable:$true] %s312
          %315 = dma.hbm_to_vmem [thread:$0]  %s302, 16, %s313, %s236
          %s316 = sadd.s32 %s230, 5
          %s317 = sld [smem:[#allocation5 + %s316]]
          %s318 = smul.addr %s317, 16
          %s319 = scalar_lea.hbm %s1, %s318
          %s320 = sadd.s32 5, %s234
          %s321 = scalar_lea.vmem [#allocation2], %s320
          // Predicated region
          $region73: #{tpu_custom_call.1} parent=51 // pred_check
            _
          $region74: #{tpu_custom_call.1} parent=51 // pred_check_branch
            %323 = sbr.rel target = $region76
          $region75: #{tpu_custom_call.1} parent=51 // pred_region
            %324 = sst [smem:[#allocation10]] [#allocation37]
            %325 = sst [smem:[#allocation11]] [#allocation36]
          $region76: #{tpu_custom_call.1} parent=51 // pred_fallthru
            _
          %327 = shalt.err (0)
          %s329 = sshll.u32 %s321, 4
          %s330 = int_to_ptr.vmem [resolvable:$true] %s329
          %332 = dma.hbm_to_vmem [thread:$0]  %s319, 16, %s330, %s236
          %s333 = sadd.s32 %s230, 6
          %s334 = sld [smem:[#allocation5 + %s333]]
          %s335 = smul.addr %s334, 16
          %s336 = scalar_lea.hbm %s1, %s335
          %s337 = sadd.s32 6, %s234
          %s338 = scalar_lea.vmem [#allocation2], %s337
          // Predicated region
          $region77: #{tpu_custom_call.1} parent=51 // pred_check
            _
          $region78: #{tpu_custom_call.1} parent=51 // pred_check_branch
            %340 = sbr.rel target = $region80
          $region79: #{tpu_custom_call.1} parent=51 // pred_region
            %341 = sst [smem:[#allocation10]] [#allocation39]
            %342 = sst [smem:[#allocation11]] [#allocation38]
          $region80: #{tpu_custom_call.1} parent=51 // pred_fallthru
            _
          %344 = shalt.err (0)
          %s346 = sshll.u32 %s338, 4
          %s347 = int_to_ptr.vmem [resolvable:$true] %s346
          %349 = dma.hbm_to_vmem [thread:$0]  %s336, 16, %s347, %s236
          %s350 = sadd.s32 %s230, 7
          %s351 = sld [smem:[#allocation5 + %s350]]
          %s352 = smul.addr %s351, 16
          %s353 = scalar_lea.hbm %s1, %s352
          %s354 = sadd.s32 7, %s234
          %s355 = scalar_lea.vmem [#allocation2], %s354
          // Predicated region
          $region81: #{tpu_custom_call.1} parent=51 // pred_check
            _
          $region82: #{tpu_custom_call.1} parent=51 // pred_check_branch
            %357 = sbr.rel target = $region84
          $region83: #{tpu_custom_call.1} parent=51 // pred_region
            %358 = sst [smem:[#allocation10]] [#allocation41]
            %359 = sst [smem:[#allocation11]] [#allocation40]
          $region84: #{tpu_custom_call.1} parent=51 // pred_fallthru
            _
          %361 = shalt.err (0)
          %s363 = sshll.u32 %s355, 4
          %s364 = int_to_ptr.vmem [resolvable:$true] %s363
          %366 = dma.hbm_to_vmem [thread:$0]  %s353, 16, %s364, %s236
        $region52: #{tpu_custom_call.1} parent=11 // pred_fallthru
          _
        %s367 = smul.u32 %s81, 8
        %s368 = scalar_lea.vmem [#allocation2], %s367
        %s369 = scalar_lea.sflag [#allocation3], %s81
        %s370 = smul.u32 8, 1
        %s371 = sshll.u32 %s370, 4
        %372 = dma.done %s369, %s371
        %v373 = vld [vmem:[%s368] sm:$0xff]
        %374 = vst [vmem:[%s65] sm:$0xff] %v373
        %s375 = sand.u32 %s38, 1
        %s376 = scalar_lea.sflag [#allocation7], %s375
        %s377 = sand.u32 %s38, 1
        %s378 = smul.addr %s377, 8
        %s379 = scalar_lea.vmem [#allocation6], %s378
        // Predicated region
        $region85: #{tpu_custom_call.1} parent=11 // pred_check
          %p380 = pneg %p44
        $region86: #{tpu_custom_call.1} parent=11 // pred_check_branch
          %382 = sbr.rel (%p380) target = $region88
        $region87: #{tpu_custom_call.1} parent=11 // pred_region
          %s383 = smul.u32 %s21, 2
          %s384 = sadd.s32 %s383, %s22
          %s386 = ssub.s32 128, 128
          %387 = vsyncadd %s376, %s386
          %s388 = smul.addr %s384, 128
          %s389 = scalar_lea.hbm %s2, %s388
          %s391 = sshll.u32 %s379, 4
          %s392 = int_to_ptr.vmem [resolvable:$true] %s391
          %394 = dma.vmem_to_hbm [thread:$0]  %s392, 128, %s389, %s376
        $region88: #{tpu_custom_call.1} parent=11 // pred_fallthru
          _
      $region12: #{tpu_custom_call.1} parent=5 // pred_fallthru
        _
      %p395 = scmp.le.s32.totalorder 1, %s15
      // Predicated region
      $region89: #{tpu_custom_call.1} parent=5 // pred_check
        %p396 = pneg %p395
      $region90: #{tpu_custom_call.1} parent=5 // pred_check_branch
        %398 = sbr.rel (%p396) target = $region92
      $region91: #{tpu_custom_call.1} parent=5 // pred_region
        %s399 = ssub.s32 %s15, 1
        // Predicated region
        $region93: #{tpu_custom_call.1} parent=91 // pred_check
          %p400 = pneg %p50
        $region94: #{tpu_custom_call.1} parent=91 // pred_check_branch
          %402 = sbr.rel (%p400) target = $region96
        $region95: #{tpu_custom_call.1} parent=91 // pred_region
          %s403 = sand.u32 %s41, 1
          %s404 = scalar_lea.sflag [#allocation7], %s403
          %s405 = sand.u32 %s41, 1
          %s406 = smul.addr %s405, 8
          %s407 = scalar_lea.vmem [#allocation6], %s406
          %408 = dma.done %s404, 128
        $region96: #{tpu_custom_call.1} parent=91 // pred_fallthru
          _
      $region92: #{tpu_custom_call.1} parent=5 // pred_fallthru
        _
    $region6: #{tpu_custom_call.1} parent=1 // loop_footer
      %s19 = sadd.s32 1, %s15
    $region7: #{tpu_custom_call.1} parent=1 // loop_footer_branch
      %14 = sbr.rel target = $region3
    $region8: #{tpu_custom_call.1} parent=1 // loop_exit
      _
    %409 = vsyncpa [#allocation7], 1
    %s410 = scalar_lea.sflag [#allocation7], 1
    %411 = vsyncpa %s410, 1
  %412 = vsyncmov [#allocation3]
  %s413 = vpop.sfrf %412
  %p414 = scmp.eq.s32.totalorder %s413, 0
  %p415 = pneg %p414
  %417 = shalt.err (%p415)
  %s418 = scalar_lea.sflag [#allocation3], 1
  %419 = vsyncmov %s418
  %s420 = vpop.sfrf %419
  %p421 = scmp.eq.s32.totalorder %s420, 0
  %p422 = pneg %p421
  %424 = shalt.err (%p422)

</llo_original>
